<compile_context>
chip_gen: v7x
topology: tpu7x:2x2x1
jax: 0.10.0
libtpu: 0.0.40
codegen_flags: <defaults>
</compile_context>

<pallas_src>
import functools

import jax
import jax.numpy as jnp
from jax.experimental import pallas as pl
from jax.experimental.pallas import tpu as pltpu

LN_EPS = 1e-5          # F.layer_norm default
L2_EPS = 1e-12         # F.normalize default
LOG2_E = 1.4426950408889634


def _round_up(x, m):
    return (x + m - 1) // m * m


def _pick_tile(n, target):
    """Largest divisor of n <= target that is a multiple of 128 (or 8, or 1)."""
    if n <= target:
        return n
    quantum = 128 if n % 128 == 0 else (8 if n % 8 == 0 else 1)
    t = (target // quantum) * quantum
    while t >= quantum:
        if n % t == 0:
            return t
        t -= quantum
    return n


def _vmem_limit_bytes():
    """Generation-aware VMEM limit (leave headroom on v7x's 64 MiB)."""
    try:
        phys = int(pltpu.get_tpu_info().vmem_capacity_bytes)
    except Exception:
        phys = 64 * 1024 * 1024            # be conservative if query fails
    if phys <= 64 * 1024 * 1024:           # v7x
        return 40 * 1024 * 1024
    return 100 * 1024 * 1024               # v5e / v6e (128 MiB physical)


# --------------------------- kernel 1: LN + QKV ------------------------------

def _ln_qkv_kernel(x_ref, gamma_ref, wqkv_ref, qs_ref, ks_ref,
                   q_out, k_out, v_out, *, heads, dim_head, seg):
    tr = x_ref.shape[1]
    hdh = heads * dim_head

    # LayerNorm (no bias); statistics in f32, bf16 MXU operand out.
    x = x_ref[0].astype(jnp.float32)                       # (tr, D)
    gamma = gamma_ref[0].astype(jnp.float32)               # (D,)
    mean = jnp.mean(x, axis=-1, keepdims=True)
    xc = x - mean
    var = jnp.mean(xc * xc, axis=-1, keepdims=True)
    xn = (xc * jax.lax.rsqrt(var + LN_EPS) * gamma[None, :]).astype(jnp.bfloat16)

    # Single head-fused QKV projection: (tr, D) x (D, 3*seg), f32 accumulate.
    qkv = jnp.dot(xn, wqkv_ref[...], preferred_element_type=jnp.float32)

    def heads_of(t):                                       # (tr, H*dh) -> (H, tr, dh)
        return jnp.transpose(t.reshape(tr, heads, dim_head), (1, 0, 2))

    def l2norm(t):                                         # per-head l2 normalize
        sq = jnp.sum(t * t, axis=-1, keepdims=True)
        return t * jax.lax.rsqrt(jnp.maximum(sq, L2_EPS * L2_EPS))

    q = heads_of(qkv[:, 0:hdh])                            # lane-aligned segment slices
    k = heads_of(qkv[:, seg:seg + hdh])
    v = heads_of(qkv[:, 2 * seg:2 * seg + hdh])

    # q_scale already carries `scale * log2(e)` (folded on the host).
    q_out[0] = (l2norm(q) * qs_ref[...]).astype(jnp.bfloat16)
    k_out[0] = (l2norm(k) * ks_ref[...]).astype(jnp.bfloat16)
    v_out[0] = v.astype(jnp.bfloat16)


# --------------- kernel 2: flash attention + output projection ---------------

def _flash_kernel(q_ref, k_ref, v_ref, wo_ref, out_ref,
                  m_scr, l_scr, acc_scr, *, tq, tk, causal):
    ki = pl.program_id(2)
    nk = pl.num_programs(2)

    @pl.when(ki == 0)
    def _():
        m_scr[...] = jnp.full(m_scr.shape, -jnp.inf, jnp.float32)
        l_scr[...] = jnp.zeros(l_scr.shape, jnp.float32)
        acc_scr[...] = jnp.zeros(acc_scr.shape, jnp.float32)

    def update():
        q = q_ref[0]                                       # (H, tq, dh) bf16
        k = k_ref[0]                                       # (H, tk, dh) bf16
        v = v_ref[0]                                       # (H, tk, dh) bf16
        # Logits are already in the log2 domain (scale*log2e folded into q).
        s = jnp.einsum('hqd,hkd->hqk', q, k,
                       preferred_element_type=jnp.float32)  # (H, tq, tk)
        if causal:
            q0 = pl.program_id(1) * tq
            k0 = ki * tk
            rows = q0 + jax.lax.broadcasted_iota(jnp.int32, (1, tq, 1), 1)
            cols = k0 + jax.lax.broadcasted_iota(jnp.int32, (1, 1, tk), 2)
            # TODO(synk): apply the mask only on diagonal chunks (skip the
            # compare+select on fully-visible chunks).
            s = jnp.where(cols > rows, jnp.finfo(jnp.float32).min, s)
        m_prev = m_scr[...]
        m_new = jnp.maximum(m_prev, jnp.max(s, axis=-1, keepdims=True))
        alpha = jnp.exp2(m_prev - m_new)                   # base-2 online softmax
        p = jnp.exp2(s - m_new)
        l_scr[...] = alpha * l_scr[...] + jnp.sum(p, axis=-1, keepdims=True)
        acc_scr[...] = alpha * acc_scr[...] + jnp.einsum(
            'hqk,hkd->hqd', p.astype(jnp.bfloat16), v,
            preferred_element_type=jnp.float32)
        m_scr[...] = m_new

    if causal:
        # Skip fully-masked KV chunks (chunk start beyond the last query row).
        pl.when(ki * tk <= pl.program_id(1) * tq + (tq - 1))(update)
    else:
        update()

    @pl.when(ki == nk - 1)
    def _():
        # Deferred softmax normalization (EUP approx reciprocal is within the
        # test tolerance; use approx=False for tight-accuracy use cases).
        # TODO(synk): if a user mask is ever wired in, guard l with a tiny floor.
        o = acc_scr[...] * pl.reciprocal(l_scr[...], approx=True)   # (H, tq, dh)
        heads, _, dh = o.shape
        o2 = jnp.transpose(o, (1, 0, 2)).reshape(tq, heads * dh)    # (tq, H*dh)
        # Single head-fused output projection, written straight to out_ref.
        out_ref[0] = jnp.dot(o2.astype(jnp.bfloat16), wo_ref[...],
                             preferred_element_type=jnp.float32
                             ).astype(out_ref.dtype)


# -------------------------------- wrapper ------------------------------------

def attention_pallas(x, params, *, scale=8.0, causal=False,
                     row_tile=512, q_tile=512, kv_tile=512):
    """x: (B, N, D) float32. params: dict of weights (see init_params)."""
    B, N, D = x.shape
    H, _, dh = params["wq"].shape
    hdh = H * dh

    tr = _pick_tile(N, row_tile)
    tq = _pick_tile(N, q_tile)
    tk = _pick_tile(N, kv_tile)
    assert N % tr == 0 and N % tq == 0 and N % tk == 0
    # TODO(synk): pad ragged N (non multiple of 8/128) instead of falling back
    # to full-sequence tiles.

    # ---- host-side packing (lane-aligned fused QKV, head-fused wo) ----
    def lanes(w):                       # (H, D, dh) -> (D, H*dh), (h, d) ordering
        return jnp.transpose(w, (1, 0, 2)).reshape(D, hdh)

    seg = _round_up(hdh, 128)           # 128-lane-aligned q|k|v segments
    wqkv = jnp.zeros((D, 3 * seg), jnp.float32)
    wqkv = wqkv.at[:, 0:hdh].set(lanes(params["wq"]))
    wqkv = wqkv.at[:, seg:seg + hdh].set(lanes(params["wk"]))
    wqkv = wqkv.at[:, 2 * seg:2 * seg + hdh].set(lanes(params["wv"]))
    wqkv = wqkv.astype(jnp.bfloat16)
    wo = params["wo"].reshape(hdh, D).astype(jnp.bfloat16)

    # Fold attention `scale` and log2(e) (exp2 softmax) into the q scale.
    qs = (params["q_scale"] * jnp.float32(scale * LOG2_E)).astype(jnp.float32)
    ks = params["k_scale"].astype(jnp.float32)

    x_bf = x.astype(jnp.bfloat16)       # halves input DMA/VMEM; LN stays in f32
    vmem_limit = _vmem_limit_bytes()

    # ---- kernel 1: LayerNorm + fused QKV + l2norm/scales -> (B, H, N, dh) ----
    qkv_shape = jax.ShapeDtypeStruct((B, H, N, dh), jnp.bfloat16)
    k1 = functools.partial(_ln_qkv_kernel, heads=H, dim_head=dh, seg=seg)
    q_arr, k_arr, v_arr = pl.pallas_call(
        k1,
        out_shape=(qkv_shape, qkv_shape, qkv_shape),
        grid_spec=pltpu.PrefetchScalarGridSpec(
            num_scalar_prefetch=0,
            grid=(B, N // tr),
            in_specs=[
                pl.BlockSpec((1, tr, D), lambda b, r: (b, r, 0)),        # x
                pl.BlockSpec((1, D), lambda b, r: (0, 0)),               # gamma
                pl.BlockSpec((D, 3 * seg), lambda b, r: (0, 0)),         # wqkv
                pl.BlockSpec((1, dh), lambda b, r: (0, 0)),              # q_scale*scale*log2e
                pl.BlockSpec((1, dh), lambda b, r: (0, 0)),              # k_scale
            ],
            out_specs=(
                pl.BlockSpec((1, H, tr, dh), lambda b, r: (b, 0, r, 0)),
                pl.BlockSpec((1, H, tr, dh), lambda b, r: (b, 0, r, 0)),
                pl.BlockSpec((1, H, tr, dh), lambda b, r: (b, 0, r, 0)),
            ),
        ),
        compiler_params=pltpu.CompilerParams(
            dimension_semantics=("parallel", "parallel"),
            vmem_limit_bytes=vmem_limit),
    )(x_bf, params["gamma"], wqkv, qs, ks)

    # ---- kernel 2: flash attention + head-fused output projection ----
    k2 = functools.partial(_flash_kernel, tq=tq, tk=tk, causal=causal)
    out = pl.pallas_call(
        k2,
        out_shape=jax.ShapeDtypeStruct((B, N, D), x.dtype),
        grid_spec=pltpu.PrefetchScalarGridSpec(
            num_scalar_prefetch=0,
            grid=(B, N // tq, N // tk),
            in_specs=[
                pl.BlockSpec((1, H, tq, dh), lambda b, qi, ki: (b, 0, qi, 0)),  # q
                pl.BlockSpec((1, H, tk, dh), lambda b, qi, ki: (b, 0, ki, 0)),  # k
                pl.BlockSpec((1, H, tk, dh), lambda b, qi, ki: (b, 0, ki, 0)),  # v
                pl.BlockSpec((hdh, D), lambda b, qi, ki: (0, 0)),               # wo
            ],
            out_specs=pl.BlockSpec((1, tq, D), lambda b, qi, ki: (b, qi, 0)),
            scratch_shapes=[
                pltpu.VMEM((H, tq, 1), jnp.float32),    # running max (log2 domain)
                pltpu.VMEM((H, tq, 1), jnp.float32),    # running denominator
                pltpu.VMEM((H, tq, dh), jnp.float32),   # running numerator
            ],
        ),
        compiler_params=pltpu.CompilerParams(
            dimension_semantics=("parallel", "parallel", "arbitrary"),
            vmem_limit_bytes=vmem_limit),
    )(q_arr, k_arr, v_arr, wo)
    return out


# ------------------------------ params / ref ----------------------------------

def init_params(key, dim, heads, dim_head):
    """Deterministic synthetic parameters (shapes match the PyTorch module)."""
    inner = heads * dim_head
    ks = jax.random.split(key, 4)
    wq = jax.random.normal(ks[0], (dim, inner), jnp.float32) * 0.05
    wk = jax.random.normal(ks[1], (dim, inner), jnp.float32) * 0.05
    wv = jax.random.normal(ks[2], (dim, inner), jnp.float32) * 0.05
    wo = jax.random.normal(ks[3], (inner, dim), jnp.float32) * 0.05
    return {
        "gamma": jnp.ones((1, dim), jnp.float32),
        "wq": wq.reshape(dim, heads, dim_head).transpose(1, 0, 2),   # (H, D, dh)
        "wk": wk.reshape(dim, heads, dim_head).transpose(1, 0, 2),
        "wv": wv.reshape(dim, heads, dim_head).transpose(1, 0, 2),
        "q_scale": jnp.ones((1, dim_head), jnp.float32),
        "k_scale": jnp.ones((1, dim_head), jnp.float32),
        "wo": wo.reshape(heads, dim_head, dim),                       # (H, dh, D)
    }


def attention_reference(x, params, *, scale=8.0, causal=False):
    """Plain-JAX f32 reference mirroring the PyTorch forward (dropout=0)."""
    gamma = params["gamma"][0]
    mean = jnp.mean(x, -1, keepdims=True)
    var = jnp.mean((x - mean) ** 2, -1, keepdims=True)
    xn = (x - mean) / jnp.sqrt(var + LN_EPS) * gamma
    q = jnp.einsum("bnd,hde->bhne", xn, params["wq"])
    k = jnp.einsum("bnd,hde->bhne", xn, params["wk"])
    v = jnp.einsum("bnd,hde->bhne", xn, params["wv"])
    l2 = lambda t: t / jnp.maximum(
        jnp.sqrt(jnp.sum(t * t, -1, keepdims=True)), L2_EPS)
    q = l2(q) * params["q_scale"][0]
    k = l2(k) * params["k_scale"][0]
    sim = jnp.einsum("bhie,bhje->bhij", q, k) * scale
    if causal:
        n = sim.shape[-1]
        cm = jnp.triu(jnp.ones((n, n), bool), 1)
        sim = jnp.where(cm, jnp.finfo(sim.dtype).min, sim)
    attn = jax.nn.softmax(sim, axis=-1)
    out = jnp.einsum("bhij,bhje->bhie", attn, v)
    return jnp.einsum("bhne,hed->bnd", out, params["wo"])


if __name__ == "__main__":
    # Small shapes consistent with the (B, N, D) input of the module.
    B, N, D = 2, 8, 32
    HEADS, DIM_HEAD = 4, 16

    key = jax.random.PRNGKey(0)
    kx, kp = jax.random.split(key)
    x = jax.random.normal(kx, (B, N, D), jnp.float32)
    params = init_params(kp, D, HEADS, DIM_HEAD)

    # TODO(synk): rel_pos_bias / mask / dropout paths not wired (defaults: None, dropout=0).
    out = attention_pallas(x, params, scale=8.0, causal=False)
    out = jax.block_until_ready(out)

    ref = attention_reference(x, params, scale=8.0, causal=False)
    assert out.shape == (B, N, D)
    # Tolerance accounts for bf16 inputs / MXU operands (f32 accumulation).
    assert jnp.allclose(out, ref, atol=2e-2, rtol=2e-2), "mismatch vs reference"

    print("KERNEL_OK")
</pallas_src>

<mosaic_0001>
module attributes {stable_mosaic.version = 11 : i64} {
  func.func @_ln_qkv_kernel(%arg0: i32, %arg1: i32, %arg2: memref<1x8x32xbf16, #tpu.memory_space<vmem>>, %arg3: memref<1x32xf32, #tpu.memory_space<vmem>>, %arg4: memref<32x384xbf16, #tpu.memory_space<vmem>>, %arg5: memref<1x16xf32, #tpu.memory_space<vmem>>, %arg6: memref<1x16xf32, #tpu.memory_space<vmem>>, %arg7: memref<1x4x8x16xbf16, #tpu.memory_space<vmem>>, %arg8: memref<1x4x8x16xbf16, #tpu.memory_space<vmem>>, %arg9: memref<1x4x8x16xbf16, #tpu.memory_space<vmem>>) attributes {dimension_semantics = [#tpu.dimension_semantics<parallel>, #tpu.dimension_semantics<parallel>], iteration_bounds = array<i64: 2, 1>, scalar_prefetch = 0 : i64, scratch_operands = 0 : i64, tpu.core_type = #tpu.core_type<tc>, window_params = [{transform_indices = @transform_0, window_bounds = array<i64: 1, 8, 32>}, {pipeline_mode = #tpu.pipeline_mode<synchronous>, transform_indices = @transform_1, window_bounds = array<i64: 1, 32>}, {pipeline_mode = #tpu.pipeline_mode<synchronous>, transform_indices = @transform_2, window_bounds = array<i64: 32, 384>}, {pipeline_mode = #tpu.pipeline_mode<synchronous>, transform_indices = @transform_3, window_bounds = array<i64: 1, 16>}, {pipeline_mode = #tpu.pipeline_mode<synchronous>, transform_indices = @transform_4, window_bounds = array<i64: 1, 16>}, {transform_indices = @transform_5, window_bounds = array<i64: 1, 4, 8, 16>}, {transform_indices = @transform_6, window_bounds = array<i64: 1, 4, 8, 16>}, {transform_indices = @transform_7, window_bounds = array<i64: 1, 4, 8, 16>}]} {
    %c0 = arith.constant 0 : index
    %c0_0 = arith.constant 0 : index
    %c0_1 = arith.constant 0 : index
    %0 = vector.load %arg2[%c0, %c0_0, %c0_1] : memref<1x8x32xbf16, #tpu.memory_space<vmem>>, vector<1x8x32xbf16>
    %1 = vector.shape_cast %0 : vector<1x8x32xbf16> to vector<8x32xbf16>
    %2 = arith.extf %1 : vector<8x32xbf16> to vector<8x32xf32>
    %c0_2 = arith.constant 0 : index
    %c0_3 = arith.constant 0 : index
    %3 = vector.load %arg3[%c0_2, %c0_3] : memref<1x32xf32, #tpu.memory_space<vmem>>, vector<1x32xf32>
    %4 = vector.shape_cast %3 : vector<1x32xf32> to vector<32xf32>
    %cst = arith.constant dense<0.000000e+00> : vector<8xf32>
    %5 = vector.multi_reduction <add>, %2, %cst [1] : vector<8x32xf32> to vector<8xf32>
    %6 = vector.shape_cast %5 : vector<8xf32> to vector<8x1xf32>
    %cst_4 = arith.constant 3.200000e+01 : f32
    %7 = vector.broadcast %cst_4 : f32 to vector<8x1xf32>
    %8 = arith.divf %6, %7 : vector<8x1xf32>
    %9 = vector.broadcast %8 : vector<8x1xf32> to vector<8x32xf32>
    %10 = arith.subf %2, %9 : vector<8x32xf32>
    %11 = arith.mulf %10, %10 : vector<8x32xf32>
    %cst_5 = arith.constant dense<0.000000e+00> : vector<8xf32>
    %12 = vector.multi_reduction <add>, %11, %cst_5 [1] : vector<8x32xf32> to vector<8xf32>
    %13 = vector.shape_cast %12 : vector<8xf32> to vector<8x1xf32>
    %cst_6 = arith.constant 3.200000e+01 : f32
    %14 = vector.broadcast %cst_6 : f32 to vector<8x1xf32>
    %15 = arith.divf %13, %14 : vector<8x1xf32>
    %cst_7 = arith.constant 9.99999974E-6 : f32
    %16 = vector.broadcast %cst_7 : f32 to vector<8x1xf32>
    %17 = arith.addf %15, %16 : vector<8x1xf32>
    %18 = math.rsqrt %17 : vector<8x1xf32>
    %19 = vector.broadcast %18 : vector<8x1xf32> to vector<8x32xf32>
    %20 = arith.mulf %10, %19 : vector<8x32xf32>
    %21 = vector.shape_cast %4 : vector<32xf32> to vector<1x32xf32>
    %22 = vector.broadcast %21 : vector<1x32xf32> to vector<8x32xf32>
    %23 = arith.mulf %20, %22 : vector<8x32xf32>
    %24 = arith.truncf %23 : vector<8x32xf32> to vector<8x32xbf16>
    %c0_8 = arith.constant 0 : index
    %c0_9 = arith.constant 0 : index
    %25 = vector.load %arg4[%c0_8, %c0_9] : memref<32x384xbf16, #tpu.memory_space<vmem>>, vector<32x384xbf16>
    %cst_10 = arith.constant dense<0.000000e+00> : vector<8x384xf32>
    %26 = tpu.matmul %24, %25, %cst_10 {dimension_numbers = #tpu.dot_dimension_numbers<[1], [0], [0], [1], [0, 0, 1, 1], [], []>} : vector<8x32xbf16>, vector<32x384xbf16>, vector<8x384xf32> -> vector<8x384xf32>
    %27 = vector.extract_strided_slice %26 {offsets = [0, 0], sizes = [8, 64], strides = [1, 1]} : vector<8x384xf32> to vector<8x64xf32>
    %28 = vector.shape_cast %27 : vector<8x64xf32> to vector<8x4x16xf32>
    %29 = tpu.transpose %28, [1, 0, 2] : vector<8x4x16xf32> -> vector<4x8x16xf32>
    %30 = vector.extract_strided_slice %26 {offsets = [0, 128], sizes = [8, 64], strides = [1, 1]} : vector<8x384xf32> to vector<8x64xf32>
    %31 = vector.shape_cast %30 : vector<8x64xf32> to vector<8x4x16xf32>
    %32 = tpu.transpose %31, [1, 0, 2] : vector<8x4x16xf32> -> vector<4x8x16xf32>
    %33 = vector.extract_strided_slice %26 {offsets = [0, 256], sizes = [8, 64], strides = [1, 1]} : vector<8x384xf32> to vector<8x64xf32>
    %34 = vector.shape_cast %33 : vector<8x64xf32> to vector<8x4x16xf32>
    %35 = tpu.transpose %34, [1, 0, 2] : vector<8x4x16xf32> -> vector<4x8x16xf32>
    %36 = arith.mulf %29, %29 : vector<4x8x16xf32>
    %cst_11 = arith.constant dense<0.000000e+00> : vector<4x8xf32>
    %37 = vector.multi_reduction <add>, %36, %cst_11 [2] : vector<4x8x16xf32> to vector<4x8xf32>
    %38 = vector.shape_cast %37 : vector<4x8xf32> to vector<4x8x1xf32>
    %cst_12 = arith.constant 1.000000e-24 : f32
    %39 = vector.broadcast %cst_12 : f32 to vector<4x8x1xf32>
    %40 = arith.maximumf %38, %39 : vector<4x8x1xf32>
    %41 = math.rsqrt %40 : vector<4x8x1xf32>
    %42 = vector.broadcast %41 : vector<4x8x1xf32> to vector<4x8x16xf32>
    %43 = arith.mulf %29, %42 : vector<4x8x16xf32>
    %c0_13 = arith.constant 0 : index
    %c0_14 = arith.constant 0 : index
    %44 = vector.load %arg5[%c0_13, %c0_14] : memref<1x16xf32, #tpu.memory_space<vmem>>, vector<1x16xf32>
    %45 = vector.shape_cast %44 : vector<1x16xf32> to vector<1x1x16xf32>
    %46 = vector.broadcast %45 : vector<1x1x16xf32> to vector<4x8x16xf32>
    %47 = arith.mulf %43, %46 : vector<4x8x16xf32>
    %48 = arith.truncf %47 : vector<4x8x16xf32> to vector<4x8x16xbf16>
    %c0_15 = arith.constant 0 : index
    %c0_16 = arith.constant 0 : index
    %c0_17 = arith.constant 0 : index
    %c0_18 = arith.constant 0 : index
    %49 = vector.load %arg7[%c0_15, %c0_16, %c0_17, %c0_18] : memref<1x4x8x16xbf16, #tpu.memory_space<vmem>>, vector<1x4x8x16xbf16>
    %50 = vector.shape_cast %49 : vector<1x4x8x16xbf16> to vector<4x8x16xbf16>
    %51 = vector.shape_cast %48 : vector<4x8x16xbf16> to vector<1x4x8x16xbf16>
    tpu.vector_store %arg7[%c0_15, %c0_16, %c0_17, %c0_18], %51 {strides = array<i32>} : memref<1x4x8x16xbf16, #tpu.memory_space<vmem>>, vector<1x4x8x16xbf16>,
    %52 = arith.mulf %32, %32 : vector<4x8x16xf32>
    %cst_19 = arith.constant dense<0.000000e+00> : vector<4x8xf32>
    %53 = vector.multi_reduction <add>, %52, %cst_19 [2] : vector<4x8x16xf32> to vector<4x8xf32>
    %54 = vector.shape_cast %53 : vector<4x8xf32> to vector<4x8x1xf32>
    %cst_20 = arith.constant 1.000000e-24 : f32
    %55 = vector.broadcast %cst_20 : f32 to vector<4x8x1xf32>
    %56 = arith.maximumf %54, %55 : vector<4x8x1xf32>
    %57 = math.rsqrt %56 : vector<4x8x1xf32>
    %58 = vector.broadcast %57 : vector<4x8x1xf32> to vector<4x8x16xf32>
    %59 = arith.mulf %32, %58 : vector<4x8x16xf32>
    %c0_21 = arith.constant 0 : index
    %c0_22 = arith.constant 0 : index
    %60 = vector.load %arg6[%c0_21, %c0_22] : memref<1x16xf32, #tpu.memory_space<vmem>>, vector<1x16xf32>
    %61 = vector.shape_cast %60 : vector<1x16xf32> to vector<1x1x16xf32>
    %62 = vector.broadcast %61 : vector<1x1x16xf32> to vector<4x8x16xf32>
    %63 = arith.mulf %59, %62 : vector<4x8x16xf32>
    %64 = arith.truncf %63 : vector<4x8x16xf32> to vector<4x8x16xbf16>
    %c0_23 = arith.constant 0 : index
    %c0_24 = arith.constant 0 : index
    %c0_25 = arith.constant 0 : index
    %c0_26 = arith.constant 0 : index
    %65 = vector.load %arg8[%c0_23, %c0_24, %c0_25, %c0_26] : memref<1x4x8x16xbf16, #tpu.memory_space<vmem>>, vector<1x4x8x16xbf16>
    %66 = vector.shape_cast %65 : vector<1x4x8x16xbf16> to vector<4x8x16xbf16>
    %67 = vector.shape_cast %64 : vector<4x8x16xbf16> to vector<1x4x8x16xbf16>
    tpu.vector_store %arg8[%c0_23, %c0_24, %c0_25, %c0_26], %67 {strides = array<i32>} : memref<1x4x8x16xbf16, #tpu.memory_space<vmem>>, vector<1x4x8x16xbf16>,
    %68 = arith.truncf %35 : vector<4x8x16xf32> to vector<4x8x16xbf16>
    %c0_27 = arith.constant 0 : index
    %c0_28 = arith.constant 0 : index
    %c0_29 = arith.constant 0 : index
    %c0_30 = arith.constant 0 : index
    %69 = vector.load %arg9[%c0_27, %c0_28, %c0_29, %c0_30] : memref<1x4x8x16xbf16, #tpu.memory_space<vmem>>, vector<1x4x8x16xbf16>
    %70 = vector.shape_cast %69 : vector<1x4x8x16xbf16> to vector<4x8x16xbf16>
    %71 = vector.shape_cast %68 : vector<4x8x16xbf16> to vector<1x4x8x16xbf16>
    tpu.vector_store %arg9[%c0_27, %c0_28, %c0_29, %c0_30], %71 {strides = array<i32>} : memref<1x4x8x16xbf16, #tpu.memory_space<vmem>>, vector<1x4x8x16xbf16>,
    return
  }
  func.func @transform_0(%arg0: i32, %arg1: i32) -> (i32, i32, i32) {
    %c0_i32 = arith.constant 0 : i32
    %c0_i32_0 = arith.constant 0 : i32
    return %arg0, %arg1, %c0_i32 : i32, i32, i32
  }
  func.func @transform_1(%arg0: i32, %arg1: i32) -> (i32, i32) {
    %c0_i32 = arith.constant 0 : i32
    %c0_i32_0 = arith.constant 0 : i32
    %c0_i32_1 = arith.constant 0 : i32
    return %c0_i32, %c0_i32_0 : i32, i32
  }
  func.func @transform_2(%arg0: i32, %arg1: i32) -> (i32, i32) {
    %c0_i32 = arith.constant 0 : i32
    %c0_i32_0 = arith.constant 0 : i32
    %c0_i32_1 = arith.constant 0 : i32
    return %c0_i32, %c0_i32_0 : i32, i32
  }
  func.func @transform_3(%arg0: i32, %arg1: i32) -> (i32, i32) {
    %c0_i32 = arith.constant 0 : i32
    %c0_i32_0 = arith.constant 0 : i32
    %c0_i32_1 = arith.constant 0 : i32
    return %c0_i32, %c0_i32_0 : i32, i32
  }
  func.func @transform_4(%arg0: i32, %arg1: i32) -> (i32, i32) {
    %c0_i32 = arith.constant 0 : i32
    %c0_i32_0 = arith.constant 0 : i32
    %c0_i32_1 = arith.constant 0 : i32
    return %c0_i32, %c0_i32_0 : i32, i32
  }
  func.func @transform_5(%arg0: i32, %arg1: i32) -> (i32, i32, i32, i32) {
    %c0_i32 = arith.constant 0 : i32
    %c0_i32_0 = arith.constant 0 : i32
    %c0_i32_1 = arith.constant 0 : i32
    return %arg0, %c0_i32, %arg1, %c0_i32_0 : i32, i32, i32, i32
  }
  func.func @transform_6(%arg0: i32, %arg1: i32) -> (i32, i32, i32, i32) {
    %c0_i32 = arith.constant 0 : i32
    %c0_i32_0 = arith.constant 0 : i32
    %c0_i32_1 = arith.constant 0 : i32
    return %arg0, %c0_i32, %arg1, %c0_i32_0 : i32, i32, i32, i32
  }
  func.func @transform_7(%arg0: i32, %arg1: i32) -> (i32, i32, i32, i32) {
    %c0_i32 = arith.constant 0 : i32
    %c0_i32_0 = arith.constant 0 : i32
    %c0_i32_1 = arith.constant 0 : i32
    return %arg0, %c0_i32, %arg1, %c0_i32_0 : i32, i32, i32, i32
  }
}

</mosaic_0001>

<llo_original>
// kernel: tpu_custom_call.1
$region0: #{tpu_custom_call.1}
  #allocation0 [shape = 'u32[]', space=smem, size = 0x4, offset = 0x4, fixed_abs, tag = 'smem constant byte address 0x4 - core index']
  #allocation1 [shape = 'u32[144,128]{1,0:T(1,128)}', space=vmem, size = 0x12000, scoped, tag = 'internal scratch']
  %s0 = inlined_call_operand.hbm [shape: bf16[2,8,32], index: 0, kind: input, shape index: {}]
  %s1 = inlined_call_operand.vmem [shape: f32[1,32], index: 1, kind: input, shape index: {}]
  %s2 = inlined_call_operand.hbm [shape: bf16[32,384], index: 2, kind: input, shape index: {}]
  %s3 = inlined_call_operand.vmem [shape: f32[1,16], index: 3, kind: input, shape index: {}]
  %s4 = inlined_call_operand.vmem [shape: f32[1,16], index: 4, kind: input, shape index: {}]
  %s5 = inlined_call_operand.hbm [shape: bf16[2,4,8,16], index: 5, kind: output, shape index: {0}]
  %s6 = inlined_call_operand.hbm [shape: bf16[2,4,8,16], index: 6, kind: output, shape index: {1}]
  %s7 = inlined_call_operand.hbm [shape: bf16[2,4,8,16], index: 7, kind: output, shape index: {2}]
  %8 = xla_tuple %s5, %s6, %s7
  %s9 = sld [smem:[#allocation0]]
  $region77: #{tpu_custom_call.1} parent=0
    _
  %s11 = ssub.s32 1, %s9
  %s12 = scalar_select 0, %s11, %s9
  $region1: #{tpu_custom_call.1} parent=0
    #allocation2 [shape = 'u8[4096]{0}', space=vmem, size = 0x1000, scoped, tag = 'input window, operand 0']
    #allocation3 [shape = 's32[2]{0}', space=sflag, size = 0x8, scoped, tag = 'scoped memory for tpu_custom_call.1']
    #allocation4 [shape = 's32[2]{0}', space=sflag, size = 0x8, scoped, tag = 'scoped memory for tpu_custom_call.1']
    #allocation5 [shape = 'u8[24576]{0}', space=vmem, size = 0x6000, scoped, tag = 'input window, operand 2, single buffered']
    #allocation6 [shape = 's32[1]{0}', space=sflag, size = 0x4, scoped, tag = 'scoped memory for tpu_custom_call.1']
    #allocation7 [shape = 'u8[16384]{0}', space=vmem, size = 0x4000, scoped, tag = 'output window, operand 0']
    #allocation8 [shape = 'u8[16384]{0}', space=vmem, size = 0x4000, scoped, tag = 'output window, operand 1']
    #allocation9 [shape = 's32[2]{0}', space=sflag, size = 0x8, scoped, tag = 'scoped memory for tpu_custom_call.1']
    #allocation10 [shape = 'u8[16384]{0}', space=vmem, size = 0x4000, scoped, tag = 'output window, operand 2']
    %13 = vsyncpa [#allocation3], 0
    %s14 = scalar_lea.sflag [#allocation3], 1
    %15 = vsyncpa %s14, 0
    %16 = vsyncpa [#allocation6], 0
    %17 = vsyncpa [#allocation4], 0
    %s18 = scalar_lea.sflag [#allocation4], 1
    %19 = vsyncpa %s18, 0
    %20 = vsyncpa [#allocation9], 0
    %s21 = scalar_lea.sflag [#allocation9], 1
    %22 = vsyncpa %s21, 0
    loop: start=0, step=1, limit=4
    $region2: #{tpu_custom_call.1} parent=1 // loop_pre_header
      _
    $region3: #{tpu_custom_call.1} parent=1 // loop_header
      %s24 = sphi 0, %s28
      %p25 = scmp.ge.s32.totalorder %s24, 4
      %s31 = sphi 0, %s43
      %s32 = sphi 0, %s39
      %s33 = sphi 0, %s31
      %s34 = sphi 0, %s32
      %s35 = sphi 0, %s33
      %s36 = sphi 0, %s34
      %s48 = sphi 0, %s50
      %s51 = sphi 0, %s48
      %s52 = sphi 0, %s51
      %s68 = sphi 0, %s52
      %s72 = sphi 0, %s72
      %s74 = sphi 0, %s72
      %s75 = sphi 0, %s74
      %s89 = sphi 0, %s75
      %s93 = sphi 0, %s93
      %s95 = sphi 0, %s93
      %s96 = sphi 0, %s95
      %s110 = sphi 0, %s96
      %s114 = sphi 0, %s114
      %s116 = sphi 0, %s114
      %s117 = sphi 0, %s116
      %s131 = sphi 0, %s117
      %s135 = sphi 0, %s135
      %s137 = sphi 0, %s135
      %s138 = sphi 0, %s137
      %s152 = sphi 0, %s138
      %s160 = sphi 0, %s162
      %s163 = sphi 0, %s160
      %s164 = sphi 0, %s163
      %s180 = sphi 0, %s164
      %s188 = sphi 0, %s190
      %s191 = sphi 0, %s188
      %s192 = sphi 0, %s191
      %s208 = sphi 0, %s192
      %s216 = sphi 0, %s218
      %s219 = sphi 0, %s216
      %s220 = sphi 0, %s219
      %s236 = sphi 0, %s220
    $region4: #{tpu_custom_call.1} parent=1 // loop_header_branch
      %27 = sbr.rel (%p25) target = $region8
    $region5: #{tpu_custom_call.1} parent=1 // loop_body
      %s29 = ssub.s32 %s24, 1
      %s30 = ssub.s32 %s24, 2
      %s37 = sadd.s32 1, %s32
      %p38 = scmp.ge.s32.totalorder %s37, 1
      %s39 = scalar_select %p38, 0, %s37
      %s40 = sadd.s32 1, %s31
      %s41 = scalar_select %p38, %s40, %s31
      %p42 = scmp.ge.s32.totalorder %s41, 2
      %s43 = scalar_select %p42, 0, %s41
      %s44 = ssub.s32 %s31, %s43
      %s45 = ssub.s32 %s32, %s39
      %s46 = sor.u32 %s44, %s45
      %p47 = scmp.eq.s32.totalorder %s46, 0
      %s49 = sadd.s32 %s48, 1
      %s50 = scalar_select %p47, %s48, %s49
      %p53 = pneg %p47
      %p54 = scmp.eq.s32.totalorder %s24, 1
      %p55 = por %p53, %p54
      %p56 = scmp.ne.s32.totalorder %s48, %s51
      %p57 = scmp.eq.s32.totalorder %s24, 0
      %p58 = por %p56, %p57
      %p59 = scmp.ne.s32.totalorder %s48, %s51
      %p60 = scmp.eq.s32.totalorder %s29, 1
      %p61 = por %p59, %p60
      %p62 = scmp.ne.s32.totalorder %s51, %s52
      %p63 = scmp.eq.s32.totalorder %s29, 0
      %p64 = por %p62, %p63
      %p65 = scmp.ne.s32.totalorder %s51, %s52
      %p66 = scmp.eq.s32.totalorder %s30, 1
      %p67 = por %p65, %p66
      %p69 = scmp.ne.s32.totalorder %s52, %s68
      %p70 = scmp.eq.s32.totalorder %s30, 0
      %p71 = por %p69, %p70
      %s73 = sadd.s32 %s72, 1
      %p76 = scmp.eq.s32.totalorder %s24, 1
      %p77 = scmp.ne.s32.totalorder %s72, %s74
      %p78 = scmp.eq.s32.totalorder %s24, 0
      %p79 = por %p77, %p78
      %p80 = scmp.ne.s32.totalorder %s72, %s74
      %p81 = scmp.eq.s32.totalorder %s29, 1
      %p82 = por %p80, %p81
      %p83 = scmp.ne.s32.totalorder %s74, %s75
      %p84 = scmp.eq.s32.totalorder %s29, 0
      %p85 = por %p83, %p84
      %p86 = scmp.ne.s32.totalorder %s74, %s75
      %p87 = scmp.eq.s32.totalorder %s30, 1
      %p88 = por %p86, %p87
      %p90 = scmp.ne.s32.totalorder %s75, %s89
      %p91 = scmp.eq.s32.totalorder %s30, 0
      %p92 = por %p90, %p91
      %s94 = sadd.s32 %s93, 1
      %p97 = scmp.eq.s32.totalorder %s24, 1
      %p98 = scmp.ne.s32.totalorder %s93, %s95
      %p99 = scmp.eq.s32.totalorder %s24, 0
      %p100 = por %p98, %p99
      %p101 = scmp.ne.s32.totalorder %s93, %s95
      %p102 = scmp.eq.s32.totalorder %s29, 1
      %p103 = por %p101, %p102
      %p104 = scmp.ne.s32.totalorder %s95, %s96
      %p105 = scmp.eq.s32.totalorder %s29, 0
      %p106 = por %p104, %p105
      %p107 = scmp.ne.s32.totalorder %s95, %s96
      %p108 = scmp.eq.s32.totalorder %s30, 1
      %p109 = por %p107, %p108
      %p111 = scmp.ne.s32.totalorder %s96, %s110
      %p112 = scmp.eq.s32.totalorder %s30, 0
      %p113 = por %p111, %p112
      %s115 = sadd.s32 %s114, 1
      %p118 = scmp.eq.s32.totalorder %s24, 1
      %p119 = scmp.ne.s32.totalorder %s114, %s116
      %p120 = scmp.eq.s32.totalorder %s24, 0
      %p121 = por %p119, %p120
      %p122 = scmp.ne.s32.totalorder %s114, %s116
      %p123 = scmp.eq.s32.totalorder %s29, 1
      %p124 = por %p122, %p123
      %p125 = scmp.ne.s32.totalorder %s116, %s117
      %p126 = scmp.eq.s32.totalorder %s29, 0
      %p127 = por %p125, %p126
      %p128 = scmp.ne.s32.totalorder %s116, %s117
      %p129 = scmp.eq.s32.totalorder %s30, 1
      %p130 = por %p128, %p129
      %p132 = scmp.ne.s32.totalorder %s117, %s131
      %p133 = scmp.eq.s32.totalorder %s30, 0
      %p134 = por %p132, %p133
      %s136 = sadd.s32 %s135, 1
      %p139 = scmp.eq.s32.totalorder %s24, 1
      %p140 = scmp.ne.s32.totalorder %s135, %s137
      %p141 = scmp.eq.s32.totalorder %s24, 0
      %p142 = por %p140, %p141
      %p143 = scmp.ne.s32.totalorder %s135, %s137
      %p144 = scmp.eq.s32.totalorder %s29, 1
      %p145 = por %p143, %p144
      %p146 = scmp.ne.s32.totalorder %s137, %s138
      %p147 = scmp.eq.s32.totalorder %s29, 0
      %p148 = por %p146, %p147
      %p149 = scmp.ne.s32.totalorder %s137, %s138
      %p150 = scmp.eq.s32.totalorder %s30, 1
      %p151 = por %p149, %p150
      %p153 = scmp.ne.s32.totalorder %s138, %s152
      %p154 = scmp.eq.s32.totalorder %s30, 0
      %p155 = por %p153, %p154
      %s156 = ssub.s32 %s31, %s43
      %s157 = ssub.s32 %s32, %s39
      %s158 = sor.u32 %s156, %s157
      %p159 = scmp.eq.s32.totalorder %s158, 0
      %s161 = sadd.s32 %s160, 1
      %s162 = scalar_select %p159, %s160, %s161
      %p165 = pneg %p159
      %p166 = scmp.eq.s32.totalorder %s24, 1
      %p167 = por %p165, %p166
      %p168 = scmp.ne.s32.totalorder %s160, %s163
      %p169 = scmp.eq.s32.totalorder %s24, 0
      %p170 = por %p168, %p169
      %p171 = scmp.ne.s32.totalorder %s160, %s163
      %p172 = scmp.eq.s32.totalorder %s29, 1
      %p173 = por %p171, %p172
      %p174 = scmp.ne.s32.totalorder %s163, %s164
      %p175 = scmp.eq.s32.totalorder %s29, 0
      %p176 = por %p174, %p175
      %p177 = scmp.ne.s32.totalorder %s163, %s164
      %p178 = scmp.eq.s32.totalorder %s30, 1
      %p179 = por %p177, %p178
      %p181 = scmp.ne.s32.totalorder %s164, %s180
      %p182 = scmp.eq.s32.totalorder %s30, 0
      %p183 = por %p181, %p182
      %s184 = ssub.s32 %s31, %s43
      %s185 = ssub.s32 %s32, %s39
      %s186 = sor.u32 %s184, %s185
      %p187 = scmp.eq.s32.totalorder %s186, 0
      %s189 = sadd.s32 %s188, 1
      %s190 = scalar_select %p187, %s188, %s189
      %p193 = pneg %p187
      %p194 = scmp.eq.s32.totalorder %s24, 1
      %p195 = por %p193, %p194
      %p196 = scmp.ne.s32.totalorder %s188, %s191
      %p197 = scmp.eq.s32.totalorder %s24, 0
      %p198 = por %p196, %p197
      %p199 = scmp.ne.s32.totalorder %s188, %s191
      %p200 = scmp.eq.s32.totalorder %s29, 1
      %p201 = por %p199, %p200
      %p202 = scmp.ne.s32.totalorder %s191, %s192
      %p203 = scmp.eq.s32.totalorder %s29, 0
      %p204 = por %p202, %p203
      %p205 = scmp.ne.s32.totalorder %s191, %s192
      %p206 = scmp.eq.s32.totalorder %s30, 1
      %p207 = por %p205, %p206
      %p209 = scmp.ne.s32.totalorder %s192, %s208
      %p210 = scmp.eq.s32.totalorder %s30, 0
      %p211 = por %p209, %p210
      %s212 = ssub.s32 %s31, %s43
      %s213 = ssub.s32 %s32, %s39
      %s214 = sor.u32 %s212, %s213
      %p215 = scmp.eq.s32.totalorder %s214, 0
      %s217 = sadd.s32 %s216, 1
      %s218 = scalar_select %p215, %s216, %s217
      %p221 = pneg %p215
      %p222 = scmp.eq.s32.totalorder %s24, 1
      %p223 = por %p221, %p222
      %p224 = scmp.ne.s32.totalorder %s216, %s219
      %p225 = scmp.eq.s32.totalorder %s24, 0
      %p226 = por %p224, %p225
      %p227 = scmp.ne.s32.totalorder %s216, %s219
      %p228 = scmp.eq.s32.totalorder %s29, 1
      %p229 = por %p227, %p228
      %p230 = scmp.ne.s32.totalorder %s219, %s220
      %p231 = scmp.eq.s32.totalorder %s29, 0
      %p232 = por %p230, %p231
      %p233 = scmp.ne.s32.totalorder %s219, %s220
      %p234 = scmp.eq.s32.totalorder %s30, 1
      %p235 = por %p233, %p234
      %p237 = scmp.ne.s32.totalorder %s220, %s236
      %p238 = scmp.eq.s32.totalorder %s30, 0
      %p239 = por %p237, %p238
      %p240 = scmp.le.s32.totalorder 1, %s24
      %p241 = scmp.lt.s32.totalorder %s24, 3
      %p242 = pnand %p240, %p241
      %p243 = pneg %p242
      // Predicated region
      $region9: #{tpu_custom_call.1} parent=5 // pred_check
        _
      $region10: #{tpu_custom_call.1} parent=5 // pred_check_branch
        %245 = sbr.rel (%p242) target = $region12
      $region11: #{tpu_custom_call.1} parent=5 // pred_region
        %s246 = ssub.s32 %s24, 1
        // Predicated region
        $region13: #{tpu_custom_call.1} parent=11 // pred_check
          %p247 = pneg %p85
        $region14: #{tpu_custom_call.1} parent=11 // pred_check_branch
          %249 = sbr.rel (%p247) target = $region16
        $region15: #{tpu_custom_call.1} parent=11 // pred_region
          _
        $region16: #{tpu_custom_call.1} parent=11 // pred_fallthru
          _
        // Predicated region
        $region17: #{tpu_custom_call.1} parent=11 // pred_check
          %p250 = pneg %p106
        $region18: #{tpu_custom_call.1} parent=11 // pred_check_branch
          %252 = sbr.rel (%p250) target = $region20
        $region19: #{tpu_custom_call.1} parent=11 // pred_region
          %s254 = ssub.s32 768, 768
          %255 = vsyncadd [#allocation6], %s254
          %s256 = sshll.u32 [#allocation5], 4
          %s257 = int_to_ptr.vmem [resolvable:$true] %s256
          %262 = dma.hbm_to_vmem [thread:$0]  %s2, 768, %s257, [#allocation6], 192, 192, 12
        $region20: #{tpu_custom_call.1} parent=11 // pred_fallthru
          _
        // Predicated region
        $region21: #{tpu_custom_call.1} parent=11 // pred_check
          %p263 = pneg %p127
        $region22: #{tpu_custom_call.1} parent=11 // pred_check_branch
          %265 = sbr.rel (%p263) target = $region24
        $region23: #{tpu_custom_call.1} parent=11 // pred_region
          _
        $region24: #{tpu_custom_call.1} parent=11 // pred_fallthru
          _
        // Predicated region
        $region25: #{tpu_custom_call.1} parent=11 // pred_check
          %p266 = pneg %p148
        $region26: #{tpu_custom_call.1} parent=11 // pred_check_branch
          %268 = sbr.rel (%p266) target = $region28
        $region27: #{tpu_custom_call.1} parent=11 // pred_region
          _
        $region28: #{tpu_custom_call.1} parent=11 // pred_fallthru
          _
      $region12: #{tpu_custom_call.1} parent=5 // pred_fallthru
        _
      %p269 = scmp.lt.s32.totalorder %s24, 2
      // Predicated region
      $region29: #{tpu_custom_call.1} parent=5 // pred_check
        %p270 = pneg %p269
      $region30: #{tpu_custom_call.1} parent=5 // pred_check_branch
        %272 = sbr.rel (%p270) target = $region32
      $region31: #{tpu_custom_call.1} parent=5 // pred_region
        // Predicated region
        $region33: #{tpu_custom_call.1} parent=31 // pred_check
          %p273 = pneg %p58
        $region34: #{tpu_custom_call.1} parent=31 // pred_check_branch
          %275 = sbr.rel (%p273) target = $region36
        $region35: #{tpu_custom_call.1} parent=31 // pred_region
          %s276 = sand.u32 %s48, 1
          %s277 = scalar_lea.sflag [#allocation3], %s276
          %s278 = sand.u32 %s48, 1
          %s279 = smul.addr %s278, 4
          %s280 = scalar_lea.vmem [#allocation2], %s279
          %s282 = ssub.s32 64, 64
          %283 = vsyncadd %s277, %s282
          %s284 = sadd.s32 %s32, %s31
          %s285 = smul.addr %s284, 64
          %s286 = scalar_lea.hbm %s0, %s285
          %s288 = sshll.u32 %s280, 4
          %s289 = int_to_ptr.vmem [resolvable:$true] %s288
          %291 = dma.hbm_to_vmem [thread:$0]  %s286, 64, %s289, %s277
        $region36: #{tpu_custom_call.1} parent=31 // pred_fallthru
          _
      $region32: #{tpu_custom_call.1} parent=5 // pred_fallthru
        _
      %p292 = scmp.le.s32.totalorder 1, %s24
      %p293 = scmp.lt.s32.totalorder %s24, 3
      %p294 = pnand %p292, %p293
      %p295 = pneg %p294
      // Predicated region
      $region37: #{tpu_custom_call.1} parent=5 // pred_check
        _
      $region38: #{tpu_custom_call.1} parent=5 // pred_check_branch
        %297 = sbr.rel (%p294) target = $region40
      $region39: #{tpu_custom_call.1} parent=5 // pred_region
        %s298 = ssub.s32 %s24, 1
        %s299 = sand.u32 %s51, 1
        %s300 = scalar_lea.sflag [#allocation3], %s299
        %s301 = sand.u32 %s51, 1
        %s302 = smul.addr %s301, 4
        %s303 = scalar_lea.vmem [#allocation2], %s302
        // Predicated region
        $region41: #{tpu_custom_call.1} parent=39 // pred_check
          %p304 = pneg %p64
        $region42: #{tpu_custom_call.1} parent=39 // pred_check_branch
          %306 = sbr.rel (%p304) target = $region44
        $region43: #{tpu_custom_call.1} parent=39 // pred_region
          %307 = dma.done %s300, 64
        $region44: #{tpu_custom_call.1} parent=39 // pred_fallthru
          _
        // Predicated region
        $region45: #{tpu_custom_call.1} parent=39 // pred_check
          %p308 = pneg %p106
        $region46: #{tpu_custom_call.1} parent=39 // pred_check_branch
          %310 = sbr.rel (%p308) target = $region48
        $region47: #{tpu_custom_call.1} parent=39 // pred_region
          %311 = dma.done [#allocation6], 768
        $region48: #{tpu_custom_call.1} parent=39 // pred_fallthru
          _
        %s312 = sand.u32 %s51, 1
        %s313 = scalar_lea.sflag [#allocation3], %s312
        %s314 = sand.u32 %s51, 1
        %s315 = smul.addr %s314, 4
        %s316 = scalar_lea.vmem [#allocation2], %s315
        %p317 = pneg %p64
        %p318 = pneg %p61
        %p319 = pneg %p85
        %p320 = pneg %p82
        %p321 = pneg %p106
        %p322 = pneg %p103
        %p323 = pneg %p127
        %p324 = pneg %p124
        %p325 = pneg %p148
        %p326 = pneg %p145
        %p327 = pneg %p176
        %p328 = pneg %p173
        %s329 = sand.u32 %s163, 1
        %s330 = scalar_lea.sflag [#allocation4], %s329
        %s331 = sand.u32 %s163, 1
        %s332 = smul.addr %s331, 16
        %s333 = scalar_lea.vmem [#allocation7], %s332
        %p334 = pneg %p204
        %p335 = pneg %p201
        %s336 = sand.u32 %s29, 1
        %s337 = scalar_lea.sflag [#allocation9], %s336
        %s338 = sand.u32 %s191, 1
        %s339 = smul.addr %s338, 16
        %s340 = scalar_lea.vmem [#allocation8], %s339
        %p341 = pneg %p232
        %p342 = pneg %p229
        %s343 = sand.u32 %s29, 1
        %s344 = scalar_lea.sflag [#allocation9], %s343
        %s345 = sand.u32 %s219, 1
        %s346 = smul.addr %s345, 16
        %s347 = scalar_lea.vmem [#allocation10], %s346
        %v349 = vld [vmem:[%s303] sm:$0xf]
        %v350 = vunpack.c.l.bf16 %v349
        %v351 = vld [vmem:[%s1] sm:$0x1]
        %vm352 = vcmask 261120
        %v353 = vsel %vm352, %v350, 0.0
        %354 = vadd.xlane.f32.xlu0 %v353
        %v355 = vpop.xlane.xlu0 %354
        %v356 = vrcp.pop 32.0
        %v357 = vmul.f32 %v355, %v356
        %v358 = vsub.f32 %v350, %v357
        %v359 = vmul.f32 %v358, %v358
        %v360 = vsel %vm352, %v359, 0.0
        %361 = vadd.xlane.f32.xlu0 %v360
        %v362 = vpop.xlane.xlu0 %361
        %v363 = vmul.f32 %v362, %v356
        %v364 = vadd.f32 %v363, 1e-05
        %v365 = vrsqrt.pop %v364
        %v366 = vmul.f32 %v358, %v365
        %v368 = vlaneseq
        %v369 = vshrl.u32 %v368, 7
        %v370 = vsub.s32 0, %v369
        %v371 = vrot.slane %v351, %v370
        %v373 = vmul.f32 %v366, %v371
        %v374 = vpack.c.bf16 %v373, %v373
        %v375 = vld [vmem:[#allocation5] sm:$0xff]
        %v376 = vld [vmem:[#allocation5 + $0x8] sm:$0xf]
        %v377 = vld [vmem:[#allocation5 + $0xc] sm:$0xff]
        %v378 = vld [vmem:[#allocation5 + $0x14] sm:$0xf]
        %v379 = vld [vmem:[#allocation5 + $0x18] sm:$0xff]
        %v380 = vld [vmem:[#allocation5 + $0x20] sm:$0xf]
        %v381 = vld [vmem:[#allocation5 + $0x24] sm:$0xff]
        %v382 = vld [vmem:[#allocation5 + $0x2c] sm:$0xf]
        %v391 = vunpack.c.l.b16 %v375
        %v392 = vunpack.c.h.b16 %v375
        %v393 = vunpack.c.l.b16 %v376
        %v394 = vunpack.c.l.b16 %v377
        %v395 = vunpack.c.h.b16 %v377
        %v396 = vunpack.c.l.b16 %v378
        %v397 = vunpack.c.l.b16 %v379
        %v398 = vunpack.c.h.b16 %v379
        %v399 = vunpack.c.l.b16 %v380
        %v400 = vunpack.c.l.b16 %v381
        %v401 = vunpack.c.h.b16 %v381
        %v402 = vunpack.c.l.b16 %v382
        %v403 = vpack.c.b16 %v394, %v391
        %v404 = vpack.c.b16 %v395, %v392
        %v405 = vpack.c.b16 %v396, %v393
        %v406 = vpack.c.b16 %v400, %v397
        %v407 = vpack.c.b16 %v401, %v398
        %v408 = vpack.c.b16 %v402, %v399
        %v416 = vsel %vm352, %v374, 0
        %418 = vmatprep.subr.bf16.mxu0 %v404
        %419 = vmatpush1.bf16.msra.mxu0 %v403
        %420 = vmatprep.subr.bf16.mxu0 %v407
        %421 = vmatpush1.bf16.msra.mxu0 %v406
        %422 = vmatprep.subr.bf16.mxu0 0
        %423 = vmatpush1.bf16.msra.mxu0 0
        %424 = vmatprep.subr.bf16.mxu0 0
        %425 = vmatpush1.bf16.msra.mxu0 0
        %426 = vmatprep.subr.bf16.mxu0 0
        %427 = vmatpush1.bf16.msra.mxu0 0
        %428 = vmatprep.subr.bf16.mxu0 0
        %429 = vmatpush1.bf16.msra.mxu0 0
        %430 = vmatprep.subr.bf16.mxu0 0
        %431 = vmatpush1.bf16.msra.mxu0 0
        %432 = vmatprep.subr.bf16.mxu0 0
        %433 = vmatpush1.bf16.msra.mxu0 0
        %434 = vmatprep.subr.bf16.mxu0 0
        %435 = vmatpush1.bf16.msra.mxu0 0
        %436 = vmatprep.subr.bf16.mxu0 0
        %437 = vmatpush1.bf16.msra.mxu0 0
        %438 = vmatprep.subr.bf16.mxu0 0
        %439 = vmatpush1.bf16.msra.mxu0 0
        %440 = vmatprep.subr.bf16.mxu0 0
        %441 = vmatpush1.bf16.msra.mxu0 0
        %442 = vmatprep.subr.bf16.mxu0 0
        %443 = vmatpush1.bf16.msra.mxu0 0
        %444 = vmatprep.subr.bf16.mxu0 0
        %445 = vmatpush1.bf16.msra.mxu0 0
        %446 = vmatprep.subr.bf16.mxu0 0
        %447 = vmatpush1.bf16.msra.mxu0 0
        %448 = vmatprep.subr.bf16.mxu0 0
        %449 = vmatpush1.bf16.msra.mxu0 0
        %450 = vmatprep.mubr.bf16.mxu0 0
        %451 = vmatmul.mubr.bf16.gmra.mrb[0].mxu0 %v416
        %v452 = vpop.f32.mrb[0].mxu0
        %v453 = vadd.f32 0.0, %v452
        %v454 = vpop.f32.mrb[0].mxu0
        %v455 = vadd.f32 0.0, %v454
        %v456 = vpop.f32.mrb[0].mxu0
        %v457 = vpop.f32.mrb[0].mxu0
        %458 = vdwg.mxu0
        %459 = vmatprep.subr.bf16.mxu0 0
        %460 = vmatpush1.bf16.msra.mxu0 %v405
        %461 = vmatprep.subr.bf16.mxu0 0
        %462 = vmatpush1.bf16.msra.mxu0 %v408
        %463 = vmatprep.subr.bf16.mxu0 0
        %464 = vmatpush1.bf16.msra.mxu0 0
        %465 = vmatprep.subr.bf16.mxu0 0
        %466 = vmatpush1.bf16.msra.mxu0 0
        %467 = vmatprep.subr.bf16.mxu0 0
        %468 = vmatpush1.bf16.msra.mxu0 0
        %469 = vmatprep.subr.bf16.mxu0 0
        %470 = vmatpush1.bf16.msra.mxu0 0
        %471 = vmatprep.subr.bf16.mxu0 0
        %472 = vmatpush1.bf16.msra.mxu0 0
        %473 = vmatprep.subr.bf16.mxu0 0
        %474 = vmatpush1.bf16.msra.mxu0 0
        %475 = vmatprep.subr.bf16.mxu0 0
        %476 = vmatpush1.bf16.msra.mxu0 0
        %477 = vmatprep.subr.bf16.mxu0 0
        %478 = vmatpush1.bf16.msra.mxu0 0
        %479 = vmatprep.subr.bf16.mxu0 0
        %480 = vmatpush1.bf16.msra.mxu0 0
        %481 = vmatprep.subr.bf16.mxu0 0
        %482 = vmatpush1.bf16.msra.mxu0 0
        %483 = vmatprep.subr.bf16.mxu0 0
        %484 = vmatpush1.bf16.msra.mxu0 0
        %485 = vmatprep.subr.bf16.mxu0 0
        %486 = vmatpush1.bf16.msra.mxu0 0
        %487 = vmatprep.subr.bf16.mxu0 0
        %488 = vmatpush1.bf16.msra.mxu0 0
        %489 = vmatprep.subr.bf16.mxu0 0
        %490 = vmatpush1.bf16.msra.mxu0 0
        %491 = vmatprep.mubr.bf16.mxu0 0
        %492 = vmatmul.mubr.bf16.gmra.mrb[0].mxu0 %v416
        %v493 = vpop.f32.mrb[0].mxu0
        %v494 = vadd.f32 0.0, %v493
        %v495 = vpop.f32.mrb[0].mxu0
        %v496 = vpop.f32.mrb[0].mxu0
        %v497 = vpop.f32.mrb[0].mxu0
        %498 = vdwg.mxu0
        %500 = vrot.lane.b32.xlu0 %v453, 112
        %v501 = vpop.permute.xlu0 %500
        %503 = vrot.lane.b32.xlu0 %v453, 96
        %v504 = vpop.permute.xlu0 %503
        %506 = vrot.lane.b32.xlu0 %v453, 80
        %v507 = vpop.permute.xlu0 %506
        %v509 = vcombine.low %v453, %v504
        %v510 = vcombine.high %v453, %v504
        %v512 = vunpack.c.l.s4 1983009808
        %v513 = vunpack.c.0.s8 %v512
        %v514 = vlaneseq
        %v515 = vshrl.u32 %v514, 7
        %v516 = vsub.s32 %v513, %v515
        %v517 = vrot.slane %v509, %v516
        %v519 = vunpack.c.l.s4 1983009808
        %v520 = vunpack.c.0.s8 %v519
        %v521 = vlaneseq
        %v522 = vshrl.u32 %v521, 7
        %v523 = vsub.s32 %v520, %v522
        %v524 = vrot.slane %v510, %v523
        %v525 = vcombine.low %v501, %v507
        %v526 = vcombine.high %v501, %v507
        %v528 = vunpack.c.l.s4 1983009808
        %v529 = vunpack.c.0.s8 %v528
        %v530 = vlaneseq
        %v531 = vshrl.u32 %v530, 7
        %v532 = vsub.s32 %v529, %v531
        %v533 = vrot.slane %v525, %v532
        %v535 = vunpack.c.l.s4 1983009808
        %v536 = vunpack.c.0.s8 %v535
        %v537 = vlaneseq
        %v538 = vshrl.u32 %v537, 7
        %v539 = vsub.s32 %v536, %v538
        %v540 = vrot.slane %v526, %v539
        %v541 = vcombine.low %v517, %v533
        %v542 = vcombine.high %v517, %v533
        %v544 = vunpack.c.l.s4 1934713408
        %v545 = vunpack.c.0.s8 %v544
        %v546 = vlaneseq
        %v547 = vshrl.u32 %v546, 7
        %v548 = vsub.s32 %v545, %v547
        %v549 = vrot.slane %v541, %v548
        %v551 = vunpack.c.l.s4 1934713408
        %v552 = vunpack.c.0.s8 %v551
        %v553 = vlaneseq
        %v554 = vshrl.u32 %v553, 7
        %v555 = vsub.s32 %v552, %v554
        %v556 = vrot.slane %v542, %v555
        %v557 = vcombine.low %v524, %v540
        %v558 = vcombine.high %v524, %v540
        %v560 = vunpack.c.l.s4 1934713408
        %v561 = vunpack.c.0.s8 %v560
        %v562 = vlaneseq
        %v563 = vshrl.u32 %v562, 7
        %v564 = vsub.s32 %v561, %v563
        %v565 = vrot.slane %v557, %v564
        %v567 = vunpack.c.l.s4 1934713408
        %v568 = vunpack.c.0.s8 %v567
        %v569 = vlaneseq
        %v570 = vshrl.u32 %v569, 7
        %v571 = vsub.s32 %v568, %v570
        %v572 = vrot.slane %v558, %v571
        %v573 = vcombine.high %v549, 0.0
        %v574 = vcombine.high %v556, 0.0
        %v575 = vcombine.high %v565, 0.0
        %v576 = vcombine.high %v572, 0.0
        %v577 = vcombine.low %v549, %v556
        %v579 = vunpack.c.l.s4 1983009808
        %v580 = vunpack.c.0.s8 %v579
        %v581 = vlaneseq
        %v582 = vshrl.u32 %v581, 7
        %v583 = vsub.s32 %v580, %v582
        %v584 = vrot.slane %v577, %v583
        %v585 = vcombine.low %v573, %v574
        %v587 = vunpack.c.l.s4 1983009808
        %v588 = vunpack.c.0.s8 %v587
        %v589 = vlaneseq
        %v590 = vshrl.u32 %v589, 7
        %v591 = vsub.s32 %v588, %v590
        %v592 = vrot.slane %v585, %v591
        %v593 = vcombine.low %v565, %v572
        %v595 = vunpack.c.l.s4 1983009808
        %v596 = vunpack.c.0.s8 %v595
        %v597 = vlaneseq
        %v598 = vshrl.u32 %v597, 7
        %v599 = vsub.s32 %v596, %v598
        %v600 = vrot.slane %v593, %v599
        %v601 = vcombine.low %v575, %v576
        %v603 = vunpack.c.l.s4 1983009808
        %v604 = vunpack.c.0.s8 %v603
        %v605 = vlaneseq
        %v606 = vshrl.u32 %v605, 7
        %v607 = vsub.s32 %v604, %v606
        %v608 = vrot.slane %v601, %v607
        %v609 = vcombine.low %v584, %v592
        %v610 = vcombine.high %v584, %v592
        %v612 = vunpack.c.l.s4 1934713408
        %v613 = vunpack.c.0.s8 %v612
        %v614 = vlaneseq
        %v615 = vshrl.u32 %v614, 7
        %v616 = vsub.s32 %v613, %v615
        %v617 = vrot.slane %v609, %v616
        %v619 = vunpack.c.l.s4 1934713408
        %v620 = vunpack.c.0.s8 %v619
        %v621 = vlaneseq
        %v622 = vshrl.u32 %v621, 7
        %v623 = vsub.s32 %v620, %v622
        %v624 = vrot.slane %v610, %v623
        %v625 = vcombine.low %v600, %v608
        %v626 = vcombine.high %v600, %v608
        %v628 = vunpack.c.l.s4 1934713408
        %v629 = vunpack.c.0.s8 %v628
        %v630 = vlaneseq
        %v631 = vshrl.u32 %v630, 7
        %v632 = vsub.s32 %v629, %v631
        %v633 = vrot.slane %v625, %v632
        %v635 = vunpack.c.l.s4 1934713408
        %v636 = vunpack.c.0.s8 %v635
        %v637 = vlaneseq
        %v638 = vshrl.u32 %v637, 7
        %v639 = vsub.s32 %v636, %v638
        %v640 = vrot.slane %v626, %v639
        %v641 = vcombine.low %v617, %v633
        %v642 = vcombine.high %v617, %v633
        %v643 = vcombine.low %v624, %v640
        %v644 = vcombine.high %v624, %v640
        %646 = vrot.lane.b32.xlu0 %v455, 112
        %v647 = vpop.permute.xlu0 %646
        %649 = vrot.lane.b32.xlu0 %v455, 96
        %v650 = vpop.permute.xlu0 %649
        %652 = vrot.lane.b32.xlu0 %v455, 80
        %v653 = vpop.permute.xlu0 %652
        %v655 = vcombine.low %v455, %v650
        %v656 = vcombine.high %v455, %v650
        %v658 = vunpack.c.l.s4 1983009808
        %v659 = vunpack.c.0.s8 %v658
        %v660 = vlaneseq
        %v661 = vshrl.u32 %v660, 7
        %v662 = vsub.s32 %v659, %v661
        %v663 = vrot.slane %v655, %v662
        %v665 = vunpack.c.l.s4 1983009808
        %v666 = vunpack.c.0.s8 %v665
        %v667 = vlaneseq
        %v668 = vshrl.u32 %v667, 7
        %v669 = vsub.s32 %v666, %v668
        %v670 = vrot.slane %v656, %v669
        %v671 = vcombine.low %v647, %v653
        %v672 = vcombine.high %v647, %v653
        %v674 = vunpack.c.l.s4 1983009808
        %v675 = vunpack.c.0.s8 %v674
        %v676 = vlaneseq
        %v677 = vshrl.u32 %v676, 7
        %v678 = vsub.s32 %v675, %v677
        %v679 = vrot.slane %v671, %v678
        %v681 = vunpack.c.l.s4 1983009808
        %v682 = vunpack.c.0.s8 %v681
        %v683 = vlaneseq
        %v684 = vshrl.u32 %v683, 7
        %v685 = vsub.s32 %v682, %v684
        %v686 = vrot.slane %v672, %v685
        %v687 = vcombine.low %v663, %v679
        %v688 = vcombine.high %v663, %v679
        %v690 = vunpack.c.l.s4 1934713408
        %v691 = vunpack.c.0.s8 %v690
        %v692 = vlaneseq
        %v693 = vshrl.u32 %v692, 7
        %v694 = vsub.s32 %v691, %v693
        %v695 = vrot.slane %v687, %v694
        %v697 = vunpack.c.l.s4 1934713408
        %v698 = vunpack.c.0.s8 %v697
        %v699 = vlaneseq
        %v700 = vshrl.u32 %v699, 7
        %v701 = vsub.s32 %v698, %v700
        %v702 = vrot.slane %v688, %v701
        %v703 = vcombine.low %v670, %v686
        %v704 = vcombine.high %v670, %v686
        %v706 = vunpack.c.l.s4 1934713408
        %v707 = vunpack.c.0.s8 %v706
        %v708 = vlaneseq
        %v709 = vshrl.u32 %v708, 7
        %v710 = vsub.s32 %v707, %v709
        %v711 = vrot.slane %v703, %v710
        %v713 = vunpack.c.l.s4 1934713408
        %v714 = vunpack.c.0.s8 %v713
        %v715 = vlaneseq
        %v716 = vshrl.u32 %v715, 7
        %v717 = vsub.s32 %v714, %v716
        %v718 = vrot.slane %v704, %v717
        %v719 = vcombine.high %v695, 0.0
        %v720 = vcombine.high %v702, 0.0
        %v721 = vcombine.high %v711, 0.0
        %v722 = vcombine.high %v718, 0.0
        %v723 = vcombine.low %v695, %v702
        %v725 = vunpack.c.l.s4 1983009808
        %v726 = vunpack.c.0.s8 %v725
        %v727 = vlaneseq
        %v728 = vshrl.u32 %v727, 7
        %v729 = vsub.s32 %v726, %v728
        %v730 = vrot.slane %v723, %v729
        %v731 = vcombine.low %v719, %v720
        %v733 = vunpack.c.l.s4 1983009808
        %v734 = vunpack.c.0.s8 %v733
        %v735 = vlaneseq
        %v736 = vshrl.u32 %v735, 7
        %v737 = vsub.s32 %v734, %v736
        %v738 = vrot.slane %v731, %v737
        %v739 = vcombine.low %v711, %v718
        %v741 = vunpack.c.l.s4 1983009808
        %v742 = vunpack.c.0.s8 %v741
        %v743 = vlaneseq
        %v744 = vshrl.u32 %v743, 7
        %v745 = vsub.s32 %v742, %v744
        %v746 = vrot.slane %v739, %v745
        %v747 = vcombine.low %v721, %v722
        %v749 = vunpack.c.l.s4 1983009808
        %v750 = vunpack.c.0.s8 %v749
        %v751 = vlaneseq
        %v752 = vshrl.u32 %v751, 7
        %v753 = vsub.s32 %v750, %v752
        %v754 = vrot.slane %v747, %v753
        %v755 = vcombine.low %v730, %v738
        %v756 = vcombine.high %v730, %v738
        %v758 = vunpack.c.l.s4 1934713408
        %v759 = vunpack.c.0.s8 %v758
        %v760 = vlaneseq
        %v761 = vshrl.u32 %v760, 7
        %v762 = vsub.s32 %v759, %v761
        %v763 = vrot.slane %v755, %v762
        %v765 = vunpack.c.l.s4 1934713408
        %v766 = vunpack.c.0.s8 %v765
        %v767 = vlaneseq
        %v768 = vshrl.u32 %v767, 7
        %v769 = vsub.s32 %v766, %v768
        %v770 = vrot.slane %v756, %v769
        %v771 = vcombine.low %v746, %v754
        %v772 = vcombine.high %v746, %v754
        %v774 = vunpack.c.l.s4 1934713408
        %v775 = vunpack.c.0.s8 %v774
        %v776 = vlaneseq
        %v777 = vshrl.u32 %v776, 7
        %v778 = vsub.s32 %v775, %v777
        %v779 = vrot.slane %v771, %v778
        %v781 = vunpack.c.l.s4 1934713408
        %v782 = vunpack.c.0.s8 %v781
        %v783 = vlaneseq
        %v784 = vshrl.u32 %v783, 7
        %v785 = vsub.s32 %v782, %v784
        %v786 = vrot.slane %v772, %v785
        %v787 = vcombine.low %v763, %v779
        %v788 = vcombine.high %v763, %v779
        %v789 = vcombine.low %v770, %v786
        %v790 = vcombine.high %v770, %v786
        %792 = vrot.lane.b32.xlu0 %v494, 112
        %v793 = vpop.permute.xlu0 %792
        %795 = vrot.lane.b32.xlu0 %v494, 96
        %v796 = vpop.permute.xlu0 %795
        %798 = vrot.lane.b32.xlu0 %v494, 80
        %v799 = vpop.permute.xlu0 %798
        %v801 = vcombine.low %v494, %v796
        %v802 = vcombine.high %v494, %v796
        %v804 = vunpack.c.l.s4 1983009808
        %v805 = vunpack.c.0.s8 %v804
        %v806 = vlaneseq
        %v807 = vshrl.u32 %v806, 7
        %v808 = vsub.s32 %v805, %v807
        %v809 = vrot.slane %v801, %v808
        %v811 = vunpack.c.l.s4 1983009808
        %v812 = vunpack.c.0.s8 %v811
        %v813 = vlaneseq
        %v814 = vshrl.u32 %v813, 7
        %v815 = vsub.s32 %v812, %v814
        %v816 = vrot.slane %v802, %v815
        %v817 = vcombine.low %v793, %v799
        %v818 = vcombine.high %v793, %v799
        %v820 = vunpack.c.l.s4 1983009808
        %v821 = vunpack.c.0.s8 %v820
        %v822 = vlaneseq
        %v823 = vshrl.u32 %v822, 7
        %v824 = vsub.s32 %v821, %v823
        %v825 = vrot.slane %v817, %v824
        %v827 = vunpack.c.l.s4 1983009808
        %v828 = vunpack.c.0.s8 %v827
        %v829 = vlaneseq
        %v830 = vshrl.u32 %v829, 7
        %v831 = vsub.s32 %v828, %v830
        %v832 = vrot.slane %v818, %v831
        %v833 = vcombine.low %v809, %v825
        %v834 = vcombine.high %v809, %v825
        %v836 = vunpack.c.l.s4 1934713408
        %v837 = vunpack.c.0.s8 %v836
        %v838 = vlaneseq
        %v839 = vshrl.u32 %v838, 7
        %v840 = vsub.s32 %v837, %v839
        %v841 = vrot.slane %v833, %v840
        %v843 = vunpack.c.l.s4 1934713408
        %v844 = vunpack.c.0.s8 %v843
        %v845 = vlaneseq
        %v846 = vshrl.u32 %v845, 7
        %v847 = vsub.s32 %v844, %v846
        %v848 = vrot.slane %v834, %v847
        %v849 = vcombine.low %v816, %v832
        %v850 = vcombine.high %v816, %v832
        %v852 = vunpack.c.l.s4 1934713408
        %v853 = vunpack.c.0.s8 %v852
        %v854 = vlaneseq
        %v855 = vshrl.u32 %v854, 7
        %v856 = vsub.s32 %v853, %v855
        %v857 = vrot.slane %v849, %v856
        %v859 = vunpack.c.l.s4 1934713408
        %v860 = vunpack.c.0.s8 %v859
        %v861 = vlaneseq
        %v862 = vshrl.u32 %v861, 7
        %v863 = vsub.s32 %v860, %v862
        %v864 = vrot.slane %v850, %v863
        %v865 = vcombine.high %v841, 0.0
        %v866 = vcombine.high %v848, 0.0
        %v867 = vcombine.high %v857, 0.0
        %v868 = vcombine.high %v864, 0.0
        %v869 = vcombine.low %v841, %v848
        %v871 = vunpack.c.l.s4 1983009808
        %v872 = vunpack.c.0.s8 %v871
        %v873 = vlaneseq
        %v874 = vshrl.u32 %v873, 7
        %v875 = vsub.s32 %v872, %v874
        %v876 = vrot.slane %v869, %v875
        %v877 = vcombine.low %v865, %v866
        %v879 = vunpack.c.l.s4 1983009808
        %v880 = vunpack.c.0.s8 %v879
        %v881 = vlaneseq
        %v882 = vshrl.u32 %v881, 7
        %v883 = vsub.s32 %v880, %v882
        %v884 = vrot.slane %v877, %v883
        %v885 = vcombine.low %v857, %v864
        %v887 = vunpack.c.l.s4 1983009808
        %v888 = vunpack.c.0.s8 %v887
        %v889 = vlaneseq
        %v890 = vshrl.u32 %v889, 7
        %v891 = vsub.s32 %v888, %v890
        %v892 = vrot.slane %v885, %v891
        %v893 = vcombine.low %v867, %v868
        %v895 = vunpack.c.l.s4 1983009808
        %v896 = vunpack.c.0.s8 %v895
        %v897 = vlaneseq
        %v898 = vshrl.u32 %v897, 7
        %v899 = vsub.s32 %v896, %v898
        %v900 = vrot.slane %v893, %v899
        %v901 = vcombine.low %v876, %v884
        %v902 = vcombine.high %v876, %v884
        %v904 = vunpack.c.l.s4 1934713408
        %v905 = vunpack.c.0.s8 %v904
        %v906 = vlaneseq
        %v907 = vshrl.u32 %v906, 7
        %v908 = vsub.s32 %v905, %v907
        %v909 = vrot.slane %v901, %v908
        %v911 = vunpack.c.l.s4 1934713408
        %v912 = vunpack.c.0.s8 %v911
        %v913 = vlaneseq
        %v914 = vshrl.u32 %v913, 7
        %v915 = vsub.s32 %v912, %v914
        %v916 = vrot.slane %v902, %v915
        %v917 = vcombine.low %v892, %v900
        %v918 = vcombine.high %v892, %v900
        %v920 = vunpack.c.l.s4 1934713408
        %v921 = vunpack.c.0.s8 %v920
        %v922 = vlaneseq
        %v923 = vshrl.u32 %v922, 7
        %v924 = vsub.s32 %v921, %v923
        %v925 = vrot.slane %v917, %v924
        %v927 = vunpack.c.l.s4 1934713408
        %v928 = vunpack.c.0.s8 %v927
        %v929 = vlaneseq
        %v930 = vshrl.u32 %v929, 7
        %v931 = vsub.s32 %v928, %v930
        %v932 = vrot.slane %v918, %v931
        %v933 = vcombine.low %v909, %v925
        %v934 = vcombine.high %v909, %v925
        %v935 = vcombine.low %v916, %v932
        %v936 = vcombine.high %v916, %v932
        %v937 = vmul.f32 %v641, %v641
        %v938 = vmul.f32 %v642, %v642
        %v939 = vmul.f32 %v643, %v643
        %v940 = vmul.f32 %v644, %v644
        %vm941 = vcmask 130048
        %v942 = vsel %vm941, %v937, 0.0
        %943 = vadd.xlane.f32.xlu0 %v942
        %v944 = vpop.xlane.xlu0 %943
        %v945 = vsel %vm941, %v938, 0.0
        %946 = vadd.xlane.f32.xlu0 %v945
        %v947 = vpop.xlane.xlu0 %946
        %v948 = vsel %vm941, %v939, 0.0
        %949 = vadd.xlane.f32.xlu0 %v948
        %v950 = vpop.xlane.xlu0 %949
        %v951 = vsel %vm941, %v940, 0.0
        %952 = vadd.xlane.f32.xlu0 %v951
        %v953 = vpop.xlane.xlu0 %952
        %v954 = vmax.f32 %v944, 1e-24
        %v955 = vmax.f32 %v947, 1e-24
        %v956 = vmax.f32 %v950, 1e-24
        %v957 = vmax.f32 %v953, 1e-24
        %v958 = vrsqrt.pop %v954
        %v959 = vrsqrt.pop %v955
        %v960 = vrsqrt.pop %v956
        %v961 = vrsqrt.pop %v957
        %v962 = vmul.f32 %v641, %v958
        %v963 = vmul.f32 %v642, %v959
        %v964 = vmul.f32 %v643, %v960
        %v965 = vmul.f32 %v644, %v961
        %v966 = vld [vmem:[%s3] sm:$0x1]
        %v968 = vlaneseq
        %v969 = vshrl.u32 %v968, 7
        %v970 = vsub.s32 0, %v969
        %v971 = vrot.slane %v966, %v970
        %v973 = vmul.f32 %v962, %v971
        %v974 = vmul.f32 %v963, %v971
        %v975 = vmul.f32 %v964, %v971
        %v976 = vmul.f32 %v965, %v971
        %v977 = vpack.c.bf16 %v973, %v973
        %v978 = vpack.c.bf16 %v974, %v974
        %v979 = vpack.c.bf16 %v975, %v975
        %v980 = vpack.c.bf16 %v976, %v976
        %vm981 = vcmask 125952
        %982 = vst.msk [vmem:[%s333] sm:$0xf] %vm981, %v977
        %983 = vst.msk [vmem:[%s333 + $0x4] sm:$0xf] %vm981, %v978
        %984 = vst.msk [vmem:[%s333 + $0x8] sm:$0xf] %vm981, %v979
        %985 = vst.msk [vmem:[%s333 + $0xc] sm:$0xf] %vm981, %v980
        %v986 = vmul.f32 %v787, %v787
        %v987 = vmul.f32 %v788, %v788
        %v988 = vmul.f32 %v789, %v789
        %v989 = vmul.f32 %v790, %v790
        %v990 = vsel %vm941, %v986, 0.0
        %991 = vadd.xlane.f32.xlu0 %v990
        %v992 = vpop.xlane.xlu0 %991
        %v993 = vsel %vm941, %v987, 0.0
        %994 = vadd.xlane.f32.xlu0 %v993
        %v995 = vpop.xlane.xlu0 %994
        %v996 = vsel %vm941, %v988, 0.0
        %997 = vadd.xlane.f32.xlu0 %v996
        %v998 = vpop.xlane.xlu0 %997
        %v999 = vsel %vm941, %v989, 0.0
        %1000 = vadd.xlane.f32.xlu0 %v999
        %v1001 = vpop.xlane.xlu0 %1000
        %v1002 = vmax.f32 %v992, 1e-24
        %v1003 = vmax.f32 %v995, 1e-24
        %v1004 = vmax.f32 %v998, 1e-24
        %v1005 = vmax.f32 %v1001, 1e-24
        %v1006 = vrsqrt.pop %v1002
        %v1007 = vrsqrt.pop %v1003
        %v1008 = vrsqrt.pop %v1004
        %v1009 = vrsqrt.pop %v1005
        %v1010 = vmul.f32 %v787, %v1006
        %v1011 = vmul.f32 %v788, %v1007
        %v1012 = vmul.f32 %v789, %v1008
        %v1013 = vmul.f32 %v790, %v1009
        %v1014 = vld [vmem:[%s4] sm:$0x1]
        %v1016 = vlaneseq
        %v1017 = vshrl.u32 %v1016, 7
        %v1018 = vsub.s32 0, %v1017
        %v1019 = vrot.slane %v1014, %v1018
        %v1021 = vmul.f32 %v1010, %v1019
        %v1022 = vmul.f32 %v1011, %v1019
        %v1023 = vmul.f32 %v1012, %v1019
        %v1024 = vmul.f32 %v1013, %v1019
        %v1025 = vpack.c.bf16 %v1021, %v1021
        %v1026 = vpack.c.bf16 %v1022, %v1022
        %v1027 = vpack.c.bf16 %v1023, %v1023
        %v1028 = vpack.c.bf16 %v1024, %v1024
        %1029 = vst.msk [vmem:[%s340] sm:$0xf] %vm981, %v1025
        %1030 = vst.msk [vmem:[%s340 + $0x4] sm:$0xf] %vm981, %v1026
        %1031 = vst.msk [vmem:[%s340 + $0x8] sm:$0xf] %vm981, %v1027
        %1032 = vst.msk [vmem:[%s340 + $0xc] sm:$0xf] %vm981, %v1028
        %v1033 = vpack.c.bf16 %v933, %v933
        %v1034 = vpack.c.bf16 %v934, %v934
        %v1035 = vpack.c.bf16 %v935, %v935
        %v1036 = vpack.c.bf16 %v936, %v936
        %1037 = vst.msk [vmem:[%s347] sm:$0xf] %vm981, %v1033
        %1038 = vst.msk [vmem:[%s347 + $0x4] sm:$0xf] %vm981, %v1034
        %1039 = vst.msk [vmem:[%s347 + $0x8] sm:$0xf] %vm981, %v1035
        %1040 = vst.msk [vmem:[%s347 + $0xc] sm:$0xf] %vm981, %v1036
        %s1041 = sand.u32 %s163, 1
        %s1042 = scalar_lea.sflag [#allocation4], %s1041
        %s1043 = sand.u32 %s163, 1
        %s1044 = smul.addr %s1043, 16
        %s1045 = scalar_lea.vmem [#allocation7], %s1044
        %s1046 = sand.u32 %s29, 1
        %s1047 = scalar_lea.sflag [#allocation9], %s1046
        %s1048 = sand.u32 %s191, 1
        %s1049 = smul.addr %s1048, 16
        %s1050 = scalar_lea.vmem [#allocation8], %s1049
        %s1051 = sand.u32 %s29, 1
        %s1052 = scalar_lea.sflag [#allocation9], %s1051
        %s1053 = sand.u32 %s219, 1
        %s1054 = smul.addr %s1053, 16
        %s1055 = scalar_lea.vmem [#allocation10], %s1054
        // Predicated region
        $region49: #{tpu_custom_call.1} parent=39 // pred_check
          %p1056 = pneg %p173
        $region50: #{tpu_custom_call.1} parent=39 // pred_check_branch
          %1058 = sbr.rel (%p1056) target = $region52
        $region51: #{tpu_custom_call.1} parent=39 // pred_region
          %s1060 = ssub.s32 256, 256
          %1061 = vsyncadd %s1042, %s1060
          %s1062 = smul.addr %s33, 4
          %s1063 = sadd.s32 %s34, %s1062
          %s1064 = smul.addr %s1063, 64
          %s1065 = scalar_lea.hbm %s5, %s1064
          %s1066 = sshll.u32 %s1045, 4
          %s1067 = int_to_ptr.vmem [resolvable:$true] %s1066
          %1072 = dma.vmem_to_hbm [thread:$0]  %s1067, 256, %s1065, %s1042, 64, 64, 4
        $region52: #{tpu_custom_call.1} parent=39 // pred_fallthru
          _
        // Predicated region
        $region53: #{tpu_custom_call.1} parent=39 // pred_check
          %p1073 = pneg %p201
        $region54: #{tpu_custom_call.1} parent=39 // pred_check_branch
          %1075 = sbr.rel (%p1073) target = $region56
        $region55: #{tpu_custom_call.1} parent=39 // pred_region
          %s1077 = ssub.s32 256, 256
          %1078 = vsyncadd %s1047, %s1077
          %s1079 = smul.addr %s33, 4
          %s1080 = sadd.s32 %s34, %s1079
          %s1081 = smul.addr %s1080, 64
          %s1082 = scalar_lea.hbm %s6, %s1081
          %s1083 = sshll.u32 %s1050, 4
          %s1084 = int_to_ptr.vmem [resolvable:$true] %s1083
          %1089 = dma.vmem_to_hbm [thread:$0]  %s1084, 256, %s1082, %s1047, 64, 64, 4
        $region56: #{tpu_custom_call.1} parent=39 // pred_fallthru
          _
        // Predicated region
        $region57: #{tpu_custom_call.1} parent=39 // pred_check
          %p1090 = pneg %p229
        $region58: #{tpu_custom_call.1} parent=39 // pred_check_branch
          %1092 = sbr.rel (%p1090) target = $region60
        $region59: #{tpu_custom_call.1} parent=39 // pred_region
          %s1094 = ssub.s32 256, 256
          %1095 = vsyncadd %s1052, %s1094
          %s1096 = smul.addr %s33, 4
          %s1097 = sadd.s32 %s34, %s1096
          %s1098 = smul.addr %s1097, 64
          %s1099 = scalar_lea.hbm %s7, %s1098
          %s1100 = sshll.u32 %s1055, 4
          %s1101 = int_to_ptr.vmem [resolvable:$true] %s1100
          %1106 = dma.vmem_to_hbm [thread:$0]  %s1101, 256, %s1099, %s1052, 64, 64, 4
        $region60: #{tpu_custom_call.1} parent=39 // pred_fallthru
          _
      $region40: #{tpu_custom_call.1} parent=5 // pred_fallthru
        _
      %p1107 = scmp.le.s32.totalorder 2, %s24
      // Predicated region
      $region61: #{tpu_custom_call.1} parent=5 // pred_check
        %p1108 = pneg %p1107
      $region62: #{tpu_custom_call.1} parent=5 // pred_check_branch
        %1110 = sbr.rel (%p1108) target = $region64
      $region63: #{tpu_custom_call.1} parent=5 // pred_region
        %s1111 = ssub.s32 %s24, 2
        // Predicated region
        $region65: #{tpu_custom_call.1} parent=63 // pred_check
          %p1112 = pneg %p179
        $region66: #{tpu_custom_call.1} parent=63 // pred_check_branch
          %1114 = sbr.rel (%p1112) target = $region68
        $region67: #{tpu_custom_call.1} parent=63 // pred_region
          %s1115 = sand.u32 %s164, 1
          %s1116 = scalar_lea.sflag [#allocation4], %s1115
          %s1117 = sand.u32 %s164, 1
          %s1118 = smul.addr %s1117, 16
          %s1119 = scalar_lea.vmem [#allocation7], %s1118
          %1120 = dma.done %s1116, 256
        $region68: #{tpu_custom_call.1} parent=63 // pred_fallthru
          _
        // Predicated region
        $region69: #{tpu_custom_call.1} parent=63 // pred_check
          %p1121 = pneg %p207
        $region70: #{tpu_custom_call.1} parent=63 // pred_check_branch
          %1123 = sbr.rel (%p1121) target = $region72
        $region71: #{tpu_custom_call.1} parent=63 // pred_region
          %s1124 = sand.u32 %s30, 1
          %s1125 = scalar_lea.sflag [#allocation9], %s1124
          %s1126 = sand.u32 %s192, 1
          %s1127 = smul.addr %s1126, 16
          %s1128 = scalar_lea.vmem [#allocation8], %s1127
          %1129 = dma.done %s1125, 256
        $region72: #{tpu_custom_call.1} parent=63 // pred_fallthru
          _
        // Predicated region
        $region73: #{tpu_custom_call.1} parent=63 // pred_check
          %p1130 = pneg %p235
        $region74: #{tpu_custom_call.1} parent=63 // pred_check_branch
          %1132 = sbr.rel (%p1130) target = $region76
        $region75: #{tpu_custom_call.1} parent=63 // pred_region
          %s1133 = sand.u32 %s30, 1
          %s1134 = scalar_lea.sflag [#allocation9], %s1133
          %s1135 = sand.u32 %s220, 1
          %s1136 = smul.addr %s1135, 16
          %s1137 = scalar_lea.vmem [#allocation10], %s1136
          %1138 = dma.done %s1134, 256
        $region76: #{tpu_custom_call.1} parent=63 // pred_fallthru
          _
      $region64: #{tpu_custom_call.1} parent=5 // pred_fallthru
        _
    $region6: #{tpu_custom_call.1} parent=1 // loop_footer
      %s28 = sadd.s32 1, %s24
    $region7: #{tpu_custom_call.1} parent=1 // loop_footer_branch
      %23 = sbr.rel target = $region3
    $region8: #{tpu_custom_call.1} parent=1 // loop_exit
      _
    %1139 = vsyncpa [#allocation3], 1
    %s1140 = scalar_lea.sflag [#allocation3], 1
    %1141 = vsyncpa %s1140, 1
    %1142 = vsyncpa [#allocation6], 1
    %1143 = vsyncpa [#allocation4], 1
    %s1144 = scalar_lea.sflag [#allocation4], 1
    %1145 = vsyncpa %s1144, 1
    %1146 = vsyncpa [#allocation9], 1
    %s1147 = scalar_lea.sflag [#allocation9], 1
    %1148 = vsyncpa %s1147, 1

</llo_original>
